<compile_context>
chip_gen: v7x
topology: tpu7x:2x2x1
jax: 0.10.0
libtpu: 0.0.40
codegen_flags: <defaults>
</compile_context>

<pallas_src>
import functools
import math

import jax
import jax.numpy as jnp
from jax import lax
from jax.experimental import pallas as pl
from jax.experimental.pallas import tpu as pltpu

# Deterministic "ELEMENTS" config (synthetic, HybrIK-style values).
ELEMENTS = dict(
    BETA_WEIGHT=1.0,
    BETA_REG_WEIGHT=0.0,
    PHI_REG_WEIGHT=0.0001,
    LEAF_REG_WEIGHT=0.0,
    THETA_WEIGHT=0.01,
    UVD24_WEIGHT=1.0,
    XYZ24_WEIGHT=0.0,
    XYZ_SMPL24_WEIGHT=0.0,
    XYZ_SMPL17_WEIGHT=0.0,
    VERTICE_WEIGHT=0.0,
    TWIST_WEIGHT=0.01,
)

_LANE = 128
_SUBLANE = 8


def _l1_smpl_kernel(
    pred_ref, target_ref, weight_ref,   # inputs  (block_b, F_pad) in VMEM
    out_ref,                            # output  (8, 128) per split, VMEM
    acc_sq_ref, acc_abs_ref, acc_w_ref,  # scratch (1, F_pad) VMEM accumulators
    *,
    n_mse,
):
    i = pl.program_id(1)

    @pl.when(i == 0)
    def _init():
        acc_sq_ref[...] = jnp.zeros_like(acc_sq_ref)
        acc_abs_ref[...] = jnp.zeros_like(acc_abs_ref)
        acc_w_ref[...] = jnp.zeros_like(acc_w_ref)

    p = pred_ref[...].astype(jnp.float32)
    t = target_ref[...].astype(jnp.float32)
    w = weight_ref[...].astype(jnp.float32)
    diff = p - t                         # factored: (pred - target) * w
    wd = diff * w

    # Full-width VPU work, row-reduce only (cheap); no lane slicing, no
    # per-step cross-lane reduction, no per-step SMEM scalar RMW chain.
    acc_sq_ref[...] += jnp.sum(wd * wd, axis=0, keepdims=True)
    acc_abs_ref[...] += jnp.sum(jnp.abs(diff) * w, axis=0, keepdims=True)
    acc_w_ref[...] += jnp.sum(w, axis=0, keepdims=True)

    @pl.when(i == pl.num_programs(1) - 1)
    def _finalize():
        f = acc_sq_ref.shape[-1]
        col = lax.broadcasted_iota(jnp.int32, (1, f), 1)
        is_mse = col < n_mse
        # MSE columns already carry sqrt(loss_weight / (B*n)) in the weights,
        # so this is the full weighted beta+theta+twist term.
        mse_sum = jnp.sum(jnp.where(is_mse, acc_sq_ref[...], 0.0))
        l1_sum = jnp.sum(jnp.where(is_mse, 0.0, acc_abs_ref[...]))
        w_sum = jnp.sum(jnp.where(is_mse, 0.0, acc_w_ref[...]))
        # Lane-dense (8,128) output tile: row 0 = mse, row 1 = l1, row 2 = w.
        row = lax.broadcasted_iota(jnp.int32, out_ref.shape, 0)
        out_ref[...] = jnp.where(
            row == 0, mse_sum,
            jnp.where(row == 1, l1_sum,
                      jnp.where(row == 2, w_sum, jnp.float32(0.0))))


def _round_up(x, m):
    return ((x + m - 1) // m) * m


def l1_loss_dim_smpl(output, labels, *, elements=ELEMENTS, size_average=True):
    """Forward of L1LossDimSMPL. `output` / `labels` are dicts of arrays."""
    pred_shape = output["pred_shape"]
    B = pred_shape.shape[0]

    pred_theta = output["pred_theta_mats"].reshape(B, -1)
    pred_phi = output["pred_phi"].reshape(B, -1)
    pred_uvd = output["pred_uvd_jts"].reshape(B, -1)

    smpl_w = labels["target_smpl_weight"].reshape(B, -1)        # (B, 1)
    target_beta = labels["target_beta"].reshape(B, -1)
    target_theta = labels["target_theta"].reshape(B, -1)
    target_theta_w = labels["target_theta_weight"].reshape(B, -1)
    target_twist = labels["target_twist"].reshape(B, -1)
    target_twist_w = labels["target_twist_weight"].reshape(B, -1)

    n_beta = pred_shape.shape[1]
    n_theta = pred_theta.shape[1]
    n_twist = pred_phi.shape[1]
    n_uvd = pred_uvd.shape[1]
    target_uvd = labels["target_uvd_29"].reshape(B, -1)[:, :n_uvd]
    target_uvd_w = labels["target_weight_29"].reshape(B, -1)[:, :n_uvd]

    n_mse = n_beta + n_theta + n_twist                          # uvd starts here
    F = n_mse + n_uvd
    F_pad = _round_up(F, _LANE)                                 # lane-dense rows

    # --- tiling: bounded, lane/sublane-aligned, optionally split across the
    # two v7x TensorCores along a "parallel" leading grid axis.
    block_b = min(1024, _round_up(B, _SUBLANE))
    num_blocks = -(-B // block_b)
    n_splits = 2 if num_blocks >= 2 else 1
    blocks_per_split = -(-num_blocks // n_splits)
    B_pad = n_splits * blocks_per_split * block_b
    pad_rows = B_pad - B
    pad_cols = F_pad - F

    def _pack(parts):
        dt = jnp.result_type(*[p.dtype for p in parts])
        slab = jnp.concatenate([p.astype(dt) for p in parts], axis=1)
        return jnp.pad(slab, ((0, pad_rows), (0, pad_cols)))

    # Per-segment MSE scale folded into the weight slab (MSE columns only).
    beta_s = math.sqrt(float(elements["BETA_WEIGHT"]) / (B * n_beta))
    theta_s = math.sqrt(float(elements["THETA_WEIGHT"]) / (B * n_theta))
    twist_s = math.sqrt(float(elements["TWIST_WEIGHT"]) / (B * n_twist))

    # TODO(synk): for very large B, feed the 12 original arrays directly (own
    # BlockSpecs) instead of materializing the three packed slabs in HBM.
    pred_slab = _pack([pred_shape, pred_theta, pred_phi, pred_uvd])
    target_slab = _pack([target_beta, target_theta, target_twist, target_uvd])
    weight_slab = _pack([
        jnp.broadcast_to(smpl_w, (B, n_beta)) * beta_s,          # beta  weight
        (smpl_w * target_theta_w) * theta_s,                     # theta weight
        target_twist_w * twist_s,                                # twist weight
        target_uvd_w,                                            # uvd (unscaled)
    ])

    slab_spec = pl.BlockSpec(
        (block_b, F_pad), lambda c, i: (c * blocks_per_split + i, 0))

    out = pl.pallas_call(
        functools.partial(_l1_smpl_kernel, n_mse=n_mse),
        grid=(n_splits, blocks_per_split),
        in_specs=[slab_spec, slab_spec, slab_spec],
        out_specs=pl.BlockSpec((_SUBLANE, _LANE), lambda c, i: (c, 0)),
        out_shape=jax.ShapeDtypeStruct((n_splits * _SUBLANE, _LANE),
                                       jnp.float32),
        scratch_shapes=[
            pltpu.VMEM((1, F_pad), jnp.float32),
            pltpu.VMEM((1, F_pad), jnp.float32),
            pltpu.VMEM((1, F_pad), jnp.float32),
        ],
        compiler_params=pltpu.CompilerParams(
            dimension_semantics=("parallel", "arbitrary")),
    )(pred_slab, target_slab, weight_slab)

    # Combine the (at most 2) per-split partials on the host-side graph.
    parts = out.reshape(n_splits, _SUBLANE, _LANE)
    mse_total = jnp.sum(parts[:, 0, 0])
    l1_total = jnp.sum(parts[:, 1, 0]) * jnp.float32(64.0)       # exact pow-2
    w_total = jnp.sum(parts[:, 2, 0])

    if size_average:
        denom = jnp.where(w_total > 0.0, w_total, jnp.float32(1.0))
        loss_uvd = jnp.where(w_total > 0.0, l1_total / denom, l1_total)
    else:
        loss_uvd = l1_total

    return mse_total + loss_uvd * jnp.float32(elements["UVD24_WEIGHT"])


def _reference(output, labels, *, elements=ELEMENTS, size_average=True):
    """Pure-JAX transcription of the PyTorch forward (for validation)."""
    mse = lambda a, b: jnp.mean(jnp.square(a - b))
    smpl_w = labels["target_smpl_weight"]
    loss_beta = mse(output["pred_shape"] * smpl_w,
                    labels["target_beta"] * smpl_w)
    B = output["pred_shape"].shape[0]
    tw = smpl_w * labels["target_theta_weight"]
    loss_theta = mse(output["pred_theta_mats"] * tw,
                     labels["target_theta"] * tw)
    ww = labels["target_twist_weight"]
    loss_twist = mse(output["pred_phi"].reshape(B, -1) * ww.reshape(B, -1),
                     labels["target_twist"].reshape(B, -1) * ww.reshape(B, -1))

    pred_uvd = output["pred_uvd_jts"]
    n = pred_uvd.shape[1]
    t_uvd = labels["target_uvd_29"][:, :n]
    t_uvd_w = labels["target_weight_29"][:, :n]
    l1 = jnp.abs(pred_uvd * 64.0 - t_uvd * 64.0) * t_uvd_w
    wsum = t_uvd_w.sum()
    if size_average:
        loss_uvd = jnp.where(wsum > 0,
                             l1.sum() / jnp.where(wsum > 0, wsum, 1.0),
                             l1.sum())
    else:
        loss_uvd = l1.sum()

    return (loss_beta * elements["BETA_WEIGHT"]
            + loss_theta * elements["THETA_WEIGHT"]
            + loss_twist * elements["TWIST_WEIGHT"]
            + loss_uvd * elements["UVD24_WEIGHT"])


if __name__ == "__main__":
    B = 2
    key = jax.random.PRNGKey(0)
    ks = jax.random.split(key, 16)

    def u(k, shape, lo=-1.0, hi=1.0):
        return jax.random.uniform(k, shape, jnp.float32, lo, hi)

    output = {
        "pred_shape": u(ks[0], (B, 10)),
        "pred_theta_mats": u(ks[1], (B, 24 * 4)),
        "pred_phi": u(ks[2], (B, 23, 2)),
        "pred_uvd_jts": u(ks[3], (B, 29 * 3)),
    }
    labels = {
        "target_smpl_weight": jnp.ones((B, 1), jnp.float32),
        "target_beta": u(ks[4], (B, 10)),
        "target_theta": u(ks[5], (B, 24 * 4)),
        "target_theta_weight": (u(ks[6], (B, 24 * 4), 0.0, 1.0) > 0.3).astype(jnp.float32),
        "target_twist": u(ks[7], (B, 23, 2)),
        "target_twist_weight": (u(ks[8], (B, 23, 2), 0.0, 1.0) > 0.3).astype(jnp.float32),
        "target_uvd_29": u(ks[9], (B, 29 * 3)),
        "target_weight_29": (u(ks[10], (B, 29 * 3), 0.0, 1.0) > 0.3).astype(jnp.float32),
    }

    loss = jax.block_until_ready(l1_loss_dim_smpl(output, labels))
    ref = jax.block_until_ready(_reference(output, labels))

    assert bool(jnp.isfinite(loss)), "loss is not finite"
    assert abs(float(loss) - float(ref)) <= 1e-4 * max(1.0, abs(float(ref))), (
        f"kernel {float(loss)} vs reference {float(ref)}")
    print("KERNEL_OK")
</pallas_src>

<mosaic_0001>
module attributes {stable_mosaic.version = 11 : i64} {
  func.func @_l1_smpl_kernel(%arg0: i32, %arg1: i32, %arg2: memref<8x256xf32, #tpu.memory_space<vmem>>, %arg3: memref<8x256xf32, #tpu.memory_space<vmem>>, %arg4: memref<8x256xf32, #tpu.memory_space<vmem>>, %arg5: memref<8x128xf32, #tpu.memory_space<vmem>>, %arg6: memref<1x256xf32, #tpu.memory_space<vmem>>, %arg7: memref<1x256xf32, #tpu.memory_space<vmem>>, %arg8: memref<1x256xf32, #tpu.memory_space<vmem>>) attributes {dimension_semantics = [#tpu.dimension_semantics<parallel>, #tpu.dimension_semantics<arbitrary>], iteration_bounds = array<i64: 1, 1>, scalar_prefetch = 0 : i64, scratch_operands = 3 : i64, tpu.core_type = #tpu.core_type<tc>, window_params = [{transform_indices = @transform_0, window_bounds = array<i64: 8, 256>}, {transform_indices = @transform_1, window_bounds = array<i64: 8, 256>}, {transform_indices = @transform_2, window_bounds = array<i64: 8, 256>}, {transform_indices = @transform_3, window_bounds = array<i64: 8, 128>}]} {
    %c0_i32 = arith.constant 0 : i32
    %0 = arith.cmpi eq, %arg1, %c0_i32 : i32
    %1 = arith.extui %0 : i1 to i32
    %c0_i32_0 = arith.constant 0 : i32
    %2 = arith.cmpi ne, %1, %c0_i32_0 : i32
    scf.if %2 {
      %cst_22 = arith.constant 0.000000e+00 : f32
      %29 = vector.broadcast %cst_22 : f32 to vector<1x256xf32>
      %c0_23 = arith.constant 0 : index
      %c0_24 = arith.constant 0 : index
      %30 = vector.load %arg6[%c0_23, %c0_24] : memref<1x256xf32, #tpu.memory_space<vmem>>, vector<1x256xf32>
      tpu.vector_store %arg6[%c0_23, %c0_24], %29 {strides = array<i32>} : memref<1x256xf32, #tpu.memory_space<vmem>>, vector<1x256xf32>,
      %cst_25 = arith.constant 0.000000e+00 : f32
      %31 = vector.broadcast %cst_25 : f32 to vector<1x256xf32>
      %c0_26 = arith.constant 0 : index
      %c0_27 = arith.constant 0 : index
      %32 = vector.load %arg7[%c0_26, %c0_27] : memref<1x256xf32, #tpu.memory_space<vmem>>, vector<1x256xf32>
      tpu.vector_store %arg7[%c0_26, %c0_27], %31 {strides = array<i32>} : memref<1x256xf32, #tpu.memory_space<vmem>>, vector<1x256xf32>,
      %cst_28 = arith.constant 0.000000e+00 : f32
      %33 = vector.broadcast %cst_28 : f32 to vector<1x256xf32>
      %c0_29 = arith.constant 0 : index
      %c0_30 = arith.constant 0 : index
      %34 = vector.load %arg8[%c0_29, %c0_30] : memref<1x256xf32, #tpu.memory_space<vmem>>, vector<1x256xf32>
      tpu.vector_store %arg8[%c0_29, %c0_30], %33 {strides = array<i32>} : memref<1x256xf32, #tpu.memory_space<vmem>>, vector<1x256xf32>,
    } else {
    }
    %c0 = arith.constant 0 : index
    %c0_1 = arith.constant 0 : index
    %3 = vector.load %arg2[%c0, %c0_1] : memref<8x256xf32, #tpu.memory_space<vmem>>, vector<8x256xf32>
    %c0_2 = arith.constant 0 : index
    %c0_3 = arith.constant 0 : index
    %4 = vector.load %arg3[%c0_2, %c0_3] : memref<8x256xf32, #tpu.memory_space<vmem>>, vector<8x256xf32>
    %c0_4 = arith.constant 0 : index
    %c0_5 = arith.constant 0 : index
    %5 = vector.load %arg4[%c0_4, %c0_5] : memref<8x256xf32, #tpu.memory_space<vmem>>, vector<8x256xf32>
    %6 = arith.subf %3, %4 : vector<8x256xf32>
    %7 = arith.mulf %6, %5 : vector<8x256xf32>
    %c0_6 = arith.constant 0 : index
    %c0_7 = arith.constant 0 : index
    %8 = vector.load %arg6[%c0_6, %c0_7] : memref<1x256xf32, #tpu.memory_space<vmem>>, vector<1x256xf32>
    %9 = arith.mulf %7, %7 : vector<8x256xf32>
    %cst = arith.constant dense<0.000000e+00> : vector<256xf32>
    %10 = vector.multi_reduction <add>, %9, %cst [0] : vector<8x256xf32> to vector<256xf32>
    %11 = vector.shape_cast %10 : vector<256xf32> to vector<1x256xf32>
    %12 = arith.addf %8, %11 : vector<1x256xf32>
    %c0_8 = arith.constant 0 : index
    %c0_9 = arith.constant 0 : index
    %13 = vector.load %arg6[%c0_8, %c0_9] : memref<1x256xf32, #tpu.memory_space<vmem>>, vector<1x256xf32>
    tpu.vector_store %arg6[%c0_8, %c0_9], %12 {strides = array<i32>} : memref<1x256xf32, #tpu.memory_space<vmem>>, vector<1x256xf32>,
    %c0_10 = arith.constant 0 : index
    %c0_11 = arith.constant 0 : index
    %14 = vector.load %arg7[%c0_10, %c0_11] : memref<1x256xf32, #tpu.memory_space<vmem>>, vector<1x256xf32>
    %15 = math.absf %6 : vector<8x256xf32>
    %16 = arith.mulf %15, %5 : vector<8x256xf32>
    %cst_12 = arith.constant dense<0.000000e+00> : vector<256xf32>
    %17 = vector.multi_reduction <add>, %16, %cst_12 [0] : vector<8x256xf32> to vector<256xf32>
    %18 = vector.shape_cast %17 : vector<256xf32> to vector<1x256xf32>
    %19 = arith.addf %14, %18 : vector<1x256xf32>
    %c0_13 = arith.constant 0 : index
    %c0_14 = arith.constant 0 : index
    %20 = vector.load %arg7[%c0_13, %c0_14] : memref<1x256xf32, #tpu.memory_space<vmem>>, vector<1x256xf32>
    tpu.vector_store %arg7[%c0_13, %c0_14], %19 {strides = array<i32>} : memref<1x256xf32, #tpu.memory_space<vmem>>, vector<1x256xf32>,
    %c0_15 = arith.constant 0 : index
    %c0_16 = arith.constant 0 : index
    %21 = vector.load %arg8[%c0_15, %c0_16] : memref<1x256xf32, #tpu.memory_space<vmem>>, vector<1x256xf32>
    %cst_17 = arith.constant dense<0.000000e+00> : vector<256xf32>
    %22 = vector.multi_reduction <add>, %5, %cst_17 [0] : vector<8x256xf32> to vector<256xf32>
    %23 = vector.shape_cast %22 : vector<256xf32> to vector<1x256xf32>
    %24 = arith.addf %21, %23 : vector<1x256xf32>
    %c0_18 = arith.constant 0 : index
    %c0_19 = arith.constant 0 : index
    %25 = vector.load %arg8[%c0_18, %c0_19] : memref<1x256xf32, #tpu.memory_space<vmem>>, vector<1x256xf32>
    tpu.vector_store %arg8[%c0_18, %c0_19], %24 {strides = array<i32>} : memref<1x256xf32, #tpu.memory_space<vmem>>, vector<1x256xf32>,
    %c0_i32_20 = arith.constant 0 : i32
    %26 = arith.cmpi eq, %arg1, %c0_i32_20 : i32
    %27 = arith.extui %26 : i1 to i32
    %c0_i32_21 = arith.constant 0 : i32
    %28 = arith.cmpi ne, %27, %c0_i32_21 : i32
    scf.if %28 {
      %29 = tpu.iota {dimensions = array<i32: 1>} : vector<1x256xi32>
      %c152_i32 = arith.constant 152 : i32
      %30 = vector.broadcast %c152_i32 : i32 to vector<1x256xi32>
      %31 = arith.cmpi slt, %29, %30 : vector<1x256xi32>
      %c0_22 = arith.constant 0 : index
      %c0_23 = arith.constant 0 : index
      %32 = vector.load %arg6[%c0_22, %c0_23] : memref<1x256xf32, #tpu.memory_space<vmem>>, vector<1x256xf32>
      %cst_24 = arith.constant 0.000000e+00 : f32
      %33 = vector.broadcast %cst_24 : f32 to vector<1x256xf32>
      %34 = arith.select %31, %32, %33 : vector<1x256xi1>, vector<1x256xf32>
      %35 = vector.shape_cast %34 : vector<1x256xf32> to vector<1x1x256xf32>
      %cst_25 = arith.constant dense<0.000000e+00> : vector<1xf32>
      %36 = vector.multi_reduction <add>, %35, %cst_25 [1, 2] : vector<1x1x256xf32> to vector<1xf32>
      %37 = vector.shape_cast %36 : vector<1xf32> to vector<1x1x1xf32>
      %38 = vector.extract %37[0, 0, 0] : f32 from vector<1x1x1xf32>
      %c0_26 = arith.constant 0 : index
      %c0_27 = arith.constant 0 : index
      %39 = vector.load %arg7[%c0_26, %c0_27] : memref<1x256xf32, #tpu.memory_space<vmem>>, vector<1x256xf32>
      %cst_28 = arith.constant 0.000000e+00 : f32
      %40 = vector.broadcast %cst_28 : f32 to vector<1x256xf32>
      %41 = arith.select %31, %40, %39 : vector<1x256xi1>, vector<1x256xf32>
      %42 = vector.shape_cast %41 : vector<1x256xf32> to vector<1x1x256xf32>
      %cst_29 = arith.constant dense<0.000000e+00> : vector<1xf32>
      %43 = vector.multi_reduction <add>, %42, %cst_29 [1, 2] : vector<1x1x256xf32> to vector<1xf32>
      %44 = vector.shape_cast %43 : vector<1xf32> to vector<1x1x1xf32>
      %45 = vector.extract %44[0, 0, 0] : f32 from vector<1x1x1xf32>
      %c0_30 = arith.constant 0 : index
      %c0_31 = arith.constant 0 : index
      %46 = vector.load %arg8[%c0_30, %c0_31] : memref<1x256xf32, #tpu.memory_space<vmem>>, vector<1x256xf32>
      %cst_32 = arith.constant 0.000000e+00 : f32
      %47 = vector.broadcast %cst_32 : f32 to vector<1x256xf32>
      %48 = arith.select %31, %47, %46 : vector<1x256xi1>, vector<1x256xf32>
      %49 = vector.shape_cast %48 : vector<1x256xf32> to vector<1x1x256xf32>
      %cst_33 = arith.constant dense<0.000000e+00> : vector<1xf32>
      %50 = vector.multi_reduction <add>, %49, %cst_33 [1, 2] : vector<1x1x256xf32> to vector<1xf32>
      %51 = vector.shape_cast %50 : vector<1xf32> to vector<1x1x1xf32>
      %52 = vector.extract %51[0, 0, 0] : f32 from vector<1x1x1xf32>
      %53 = tpu.iota {dimensions = array<i32: 0>} : vector<8x128xi32>
      %c0_i32_34 = arith.constant 0 : i32
      %54 = vector.broadcast %c0_i32_34 : i32 to vector<8x128xi32>
      %55 = arith.cmpi eq, %53, %54 : vector<8x128xi32>
      %c1_i32 = arith.constant 1 : i32
      %56 = vector.broadcast %c1_i32 : i32 to vector<8x128xi32>
      %57 = arith.cmpi eq, %53, %56 : vector<8x128xi32>
      %c2_i32 = arith.constant 2 : i32
      %58 = vector.broadcast %c2_i32 : i32 to vector<8x128xi32>
      %59 = arith.cmpi eq, %53, %58 : vector<8x128xi32>
      %cst_35 = arith.constant 0.000000e+00 : f32
      %60 = vector.broadcast %52 : f32 to vector<8x128xf32>
      %61 = vector.broadcast %cst_35 : f32 to vector<8x128xf32>
      %62 = arith.select %59, %60, %61 : vector<8x128xi1>, vector<8x128xf32>
      %63 = vector.broadcast %45 : f32 to vector<8x128xf32>
      %64 = arith.select %57, %63, %62 : vector<8x128xi1>, vector<8x128xf32>
      %65 = vector.broadcast %38 : f32 to vector<8x128xf32>
      %66 = arith.select %55, %65, %64 : vector<8x128xi1>, vector<8x128xf32>
      %c0_36 = arith.constant 0 : index
      %c0_37 = arith.constant 0 : index
      %67 = vector.load %arg5[%c0_36, %c0_37] : memref<8x128xf32, #tpu.memory_space<vmem>>, vector<8x128xf32>
      tpu.vector_store %arg5[%c0_36, %c0_37], %66 {strides = array<i32>} : memref<8x128xf32, #tpu.memory_space<vmem>>, vector<8x128xf32>,
    } else {
    }
    return
  }
  func.func @transform_0(%arg0: i32, %arg1: i32) -> (i32, i32) {
    %c1_i32 = arith.constant 1 : i32
    %0 = arith.muli %arg0, %c1_i32 : i32
    %1 = arith.addi %0, %arg1 : i32
    %c0_i32 = arith.constant 0 : i32
    %c0_i32_0 = arith.constant 0 : i32
    return %1, %c0_i32 : i32, i32
  }
  func.func @transform_1(%arg0: i32, %arg1: i32) -> (i32, i32) {
    %c1_i32 = arith.constant 1 : i32
    %0 = arith.muli %arg0, %c1_i32 : i32
    %1 = arith.addi %0, %arg1 : i32
    %c0_i32 = arith.constant 0 : i32
    %c0_i32_0 = arith.constant 0 : i32
    return %1, %c0_i32 : i32, i32
  }
  func.func @transform_2(%arg0: i32, %arg1: i32) -> (i32, i32) {
    %c1_i32 = arith.constant 1 : i32
    %0 = arith.muli %arg0, %c1_i32 : i32
    %1 = arith.addi %0, %arg1 : i32
    %c0_i32 = arith.constant 0 : i32
    %c0_i32_0 = arith.constant 0 : i32
    return %1, %c0_i32 : i32, i32
  }
  func.func @transform_3(%arg0: i32, %arg1: i32) -> (i32, i32) {
    %c0_i32 = arith.constant 0 : i32
    %c0_i32_0 = arith.constant 0 : i32
    return %arg0, %c0_i32 : i32, i32
  }
}

</mosaic_0001>

<llo_original>
// kernel: tpu_custom_call.1
$region0: #{tpu_custom_call.1}
  #allocation0 [shape = 'u32[]', space=smem, size = 0x4, offset = 0x4, fixed_abs, tag = 'smem constant byte address 0x4 - core index']
  #allocation1 [shape = 'u32[144,128]{1,0:T(1,128)}', space=vmem, size = 0x12000, scoped, tag = 'internal scratch']
  #allocation2 [shape = 'f32[1,256]{1,0:T(1,128)}', space=vmem, size = 0x400, scoped, tag = 'scratch operand']
  #allocation3 [shape = 'f32[1,256]{1,0:T(1,128)}', space=vmem, size = 0x400, scoped, tag = 'scratch operand']
  #allocation4 [shape = 'f32[1,256]{1,0:T(1,128)}', space=vmem, size = 0x400, scoped, tag = 'scratch operand']
  %s0 = inlined_call_operand.hbm [shape: f32[8,256], index: 0, kind: input, shape index: {}]
  %s1 = inlined_call_operand.hbm [shape: f32[8,256], index: 1, kind: input, shape index: {}]
  %s2 = inlined_call_operand.hbm [shape: f32[8,256], index: 2, kind: input, shape index: {}]
  %s3 = inlined_call_operand.hbm [shape: f32[8,128], index: 3, kind: output, shape index: {}]
  %s4 = sld [smem:[#allocation0]]
  $region42: #{tpu_custom_call.1} parent=0
    _
  %s6 = ssub.s32 1, %s4
  %s7 = scalar_select 0, %s6, %s4
  $region1: #{tpu_custom_call.1} parent=0
    #allocation5 [shape = 'u8[8192]{0}', space=vmem, size = 0x2000, scoped, tag = 'input window, operand 0, single buffered']
    #allocation6 [shape = 's32[1]{0}', space=sflag, size = 0x4, scoped, tag = 'scoped memory for tpu_custom_call.1']
    #allocation7 [shape = 's32[1]{0}', space=sflag, size = 0x4, scoped, tag = 'scoped memory for tpu_custom_call.1']
    #allocation8 [shape = 'u8[8192]{0}', space=vmem, size = 0x2000, scoped, tag = 'input window, operand 1, single buffered']
    #allocation9 [shape = 's32[1]{0}', space=sflag, size = 0x4, scoped, tag = 'scoped memory for tpu_custom_call.1']
    #allocation10 [shape = 'u8[8192]{0}', space=vmem, size = 0x2000, scoped, tag = 'input window, operand 2, single buffered']
    #allocation11 [shape = 'u8[4096]{0}', space=vmem, size = 0x1000, scoped, tag = 'output window, operand 0, single buffered']
    %8 = vsyncpa [#allocation6], 0
    %9 = vsyncpa [#allocation9], 0
    %10 = vsyncpa [#allocation7], 0
    // Predicated region
    $region2: #{tpu_custom_call.1} parent=1 // pred_check
      _
    $region3: #{tpu_custom_call.1} parent=1 // pred_check_branch
      %12 = sbr.rel (0) target = $region5
    $region4: #{tpu_custom_call.1} parent=1 // pred_region
      %s13 = sadd.s32 0, 0
      %s15 = ssub.s32 256, 256
      %16 = vsyncadd [#allocation6], %s15
      %s17 = smul.addr %s13, 2
      %s18 = smul.addr %s17, 128
      %s19 = scalar_lea.hbm %s0, %s18
      %s21 = sshll.u32 [#allocation5], 4
      %s22 = int_to_ptr.vmem [resolvable:$true] %s21
      %24 = dma.hbm_to_vmem [thread:$0]  %s19, 256, %s22, [#allocation6]
    $region5: #{tpu_custom_call.1} parent=1 // pred_fallthru
      _
    // Predicated region
    $region6: #{tpu_custom_call.1} parent=1 // pred_check
      _
    $region7: #{tpu_custom_call.1} parent=1 // pred_check_branch
      %26 = sbr.rel (0) target = $region9
    $region8: #{tpu_custom_call.1} parent=1 // pred_region
      %s27 = sadd.s32 0, 0
      %s29 = ssub.s32 256, 256
      %30 = vsyncadd [#allocation9], %s29
      %s31 = smul.addr %s27, 2
      %s32 = smul.addr %s31, 128
      %s33 = scalar_lea.hbm %s1, %s32
      %s35 = sshll.u32 [#allocation8], 4
      %s36 = int_to_ptr.vmem [resolvable:$true] %s35
      %38 = dma.hbm_to_vmem [thread:$0]  %s33, 256, %s36, [#allocation9]
    $region9: #{tpu_custom_call.1} parent=1 // pred_fallthru
      _
    // Predicated region
    $region10: #{tpu_custom_call.1} parent=1 // pred_check
      _
    $region11: #{tpu_custom_call.1} parent=1 // pred_check_branch
      %40 = sbr.rel (0) target = $region13
    $region12: #{tpu_custom_call.1} parent=1 // pred_region
      %s41 = sadd.s32 0, 0
      %s43 = ssub.s32 256, 256
      %44 = vsyncadd [#allocation9], %s43
      %s45 = smul.addr %s41, 2
      %s46 = smul.addr %s45, 128
      %s47 = scalar_lea.hbm %s2, %s46
      %s49 = sshll.u32 [#allocation10], 4
      %s50 = int_to_ptr.vmem [resolvable:$true] %s49
      %52 = dma.hbm_to_vmem [thread:$0]  %s47, 256, %s50, [#allocation9]
    $region13: #{tpu_custom_call.1} parent=1 // pred_fallthru
      _
    // Predicated region
    $region14: #{tpu_custom_call.1} parent=1 // pred_check
      _
    $region15: #{tpu_custom_call.1} parent=1 // pred_check_branch
      %54 = sbr.rel (0) target = $region17
    $region16: #{tpu_custom_call.1} parent=1 // pred_region
      %55 = dma.done [#allocation6], 256
    $region17: #{tpu_custom_call.1} parent=1 // pred_fallthru
      _
    // Predicated region
    $region18: #{tpu_custom_call.1} parent=1 // pred_check
      _
    $region19: #{tpu_custom_call.1} parent=1 // pred_check_branch
      %57 = sbr.rel (0) target = $region21
    $region20: #{tpu_custom_call.1} parent=1 // pred_region
      %58 = dma.done [#allocation9], 256
    $region21: #{tpu_custom_call.1} parent=1 // pred_fallthru
      _
    // Predicated region
    $region22: #{tpu_custom_call.1} parent=1 // pred_check
      _
    $region23: #{tpu_custom_call.1} parent=1 // pred_check_branch
      %60 = sbr.rel (0) target = $region25
    $region24: #{tpu_custom_call.1} parent=1 // pred_region
      %61 = dma.done [#allocation9], 256
    $region25: #{tpu_custom_call.1} parent=1 // pred_fallthru
      _
    %s62 = sadd.s32 0, 0
    %s63 = sadd.s32 0, 0
    %s64 = sadd.s32 0, 0
    %p65 = scmp.eq.s32.totalorder 0, 0
    // Predicated region
    $region26: #{tpu_custom_call.1} parent=1 // pred_check
      %p66 = pneg %p65
    $region27: #{tpu_custom_call.1} parent=1 // pred_check_branch
      %68 = sbr.rel (%p66) target = $region29
    $region28: #{tpu_custom_call.1} parent=1 // pred_region
      %v69 = vlaneseq
      %vm70 = vcmp.ge.s32.totalorder %v69, 0
      %vm71 = vcmp.lt.s32.totalorder %v69, 256
      %vm72 = vmand %vm70, %vm71
      %73 = vst.msk [vmem:[#allocation2] sm:$0x3] %vm72, 0.0
      %74 = vst.msk [vmem:[#allocation3] sm:$0x3] %vm72, 0.0
      %75 = vst.msk [vmem:[#allocation4] sm:$0x3] %vm72, 0.0
    $region29: #{tpu_custom_call.1} parent=1 // pred_fallthru
      _
    %v76 = vld [vmem:[#allocation5] sm:$0xff]
    %v77 = vld [vmem:[#allocation5 + $0x8] sm:$0xff]
    %v78 = vld [vmem:[#allocation8] sm:$0xff]
    %v79 = vld [vmem:[#allocation8 + $0x8] sm:$0xff]
    %v80 = vld [vmem:[#allocation10] sm:$0xff]
    %v81 = vld [vmem:[#allocation10 + $0x8] sm:$0xff]
    %v82 = vsub.f32 %v76, %v78
    %v83 = vsub.f32 %v77, %v79
    %v84 = vmul.f32 %v82, %v80
    %v85 = vmul.f32 %v83, %v81
    %v86 = vld [vmem:[#allocation2] sm:$0x3]
    %v87 = vmul.f32 %v84, %v84
    %v88 = vmul.f32 %v85, %v85
    %v89 = vrot.slane %v87, 4
    %v90 = vadd.f32 %v87, %v89
    %v91 = vrot.slane %v90, 2
    %v92 = vadd.f32 %v90, %v91
    %v93 = vrot.slane %v92, 1
    %v94 = vadd.f32 %v92, %v93
    %v95 = vrot.slane %v88, 4
    %v96 = vadd.f32 %v88, %v95
    %v97 = vrot.slane %v96, 2
    %v98 = vadd.f32 %v96, %v97
    %v99 = vrot.slane %v98, 1
    %v100 = vadd.f32 %v98, %v99
    %v103 = vcombine.low %v94, %v100
    %v105 = vunpack.c.l.s4 1966171168
    %v106 = vunpack.c.0.s8 %v105
    %v107 = vlaneseq
    %v108 = vshrl.u32 %v107, 7
    %v109 = vsub.s32 %v106, %v108
    %v110 = vrot.slane %v103, %v109
    %v112 = vunpack.c.l.s4 1966171168
    %v113 = vunpack.c.0.s8 %v112
    %v114 = vlaneseq
    %v115 = vshrl.u32 %v114, 7
    %v116 = vsub.s32 %v113, %v115
    %v117 = vrot.slane %v110, %v116
    %v119 = vadd.f32 %v86, %v117
    %v120 = vlaneseq
    %vm121 = vcmp.ge.s32.totalorder %v120, 0
    %vm122 = vcmp.lt.s32.totalorder %v120, 256
    %vm123 = vmand %vm121, %vm122
    %124 = vst.msk [vmem:[#allocation2] sm:$0x3] %vm123, %v119
    %v125 = vld [vmem:[#allocation3] sm:$0x3]
    %v126 = vand.u32 2147483647, %v82
    %v127 = vand.u32 2147483647, %v83
    %v128 = vmul.f32 %v126, %v80
    %v129 = vmul.f32 %v127, %v81
    %v130 = vrot.slane %v128, 4
    %v131 = vadd.f32 %v128, %v130
    %v132 = vrot.slane %v131, 2
    %v133 = vadd.f32 %v131, %v132
    %v134 = vrot.slane %v133, 1
    %v135 = vadd.f32 %v133, %v134
    %v136 = vrot.slane %v129, 4
    %v137 = vadd.f32 %v129, %v136
    %v138 = vrot.slane %v137, 2
    %v139 = vadd.f32 %v137, %v138
    %v140 = vrot.slane %v139, 1
    %v141 = vadd.f32 %v139, %v140
    %v144 = vcombine.low %v135, %v141
    %v146 = vunpack.c.l.s4 1966171168
    %v147 = vunpack.c.0.s8 %v146
    %v148 = vlaneseq
    %v149 = vshrl.u32 %v148, 7
    %v150 = vsub.s32 %v147, %v149
    %v151 = vrot.slane %v144, %v150
    %v153 = vunpack.c.l.s4 1966171168
    %v154 = vunpack.c.0.s8 %v153
    %v155 = vlaneseq
    %v156 = vshrl.u32 %v155, 7
    %v157 = vsub.s32 %v154, %v156
    %v158 = vrot.slane %v151, %v157
    %v160 = vadd.f32 %v125, %v158
    %161 = vst.msk [vmem:[#allocation3] sm:$0x3] %vm123, %v160
    %v162 = vld [vmem:[#allocation4] sm:$0x3]
    %v163 = vrot.slane %v80, 4
    %v164 = vadd.f32 %v80, %v163
    %v165 = vrot.slane %v164, 2
    %v166 = vadd.f32 %v164, %v165
    %v167 = vrot.slane %v166, 1
    %v168 = vadd.f32 %v166, %v167
    %v169 = vrot.slane %v81, 4
    %v170 = vadd.f32 %v81, %v169
    %v171 = vrot.slane %v170, 2
    %v172 = vadd.f32 %v170, %v171
    %v173 = vrot.slane %v172, 1
    %v174 = vadd.f32 %v172, %v173
    %v177 = vcombine.low %v168, %v174
    %v179 = vunpack.c.l.s4 1966171168
    %v180 = vunpack.c.0.s8 %v179
    %v181 = vlaneseq
    %v182 = vshrl.u32 %v181, 7
    %v183 = vsub.s32 %v180, %v182
    %v184 = vrot.slane %v177, %v183
    %v186 = vunpack.c.l.s4 1966171168
    %v187 = vunpack.c.0.s8 %v186
    %v188 = vlaneseq
    %v189 = vshrl.u32 %v188, 7
    %v190 = vsub.s32 %v187, %v189
    %v191 = vrot.slane %v184, %v190
    %v193 = vadd.f32 %v162, %v191
    %194 = vst.msk [vmem:[#allocation4] sm:$0x3] %vm123, %v193
    // Predicated region
    $region30: #{tpu_custom_call.1} parent=1 // pred_check
      %p195 = pneg %p65
    $region31: #{tpu_custom_call.1} parent=1 // pred_check_branch
      %197 = sbr.rel (%p195) target = $region33
    $region32: #{tpu_custom_call.1} parent=1 // pred_region
      %v198 = vlaneseq
      %v199 = vand.u32 %v198, 127
      %v200 = vadd.s32 %v199, 128
      %vm201 = vcmp.lt.s32.totalorder %v199, 152
      %vm202 = vcmp.lt.s32.totalorder %v200, 152
      %v203 = vld [vmem:[#allocation2] sm:$0x3]
      %v205 = vlaneseq
      %v206 = vshrl.u32 %v205, 7
      %v207 = vsub.s32 0, %v206
      %v208 = vrot.slane %v203, %v207
      %v209 = vlaneseq
      %v210 = vshrl.u32 %v209, 7
      %v211 = vsub.s32 1, %v210
      %v212 = vrot.slane %v203, %v211
      %v215 = vsel %vm201, %v208, 0.0
      %v216 = vsel %vm202, %v212, 0.0
      %vm217 = vcmask 1040384
      %v218 = vsel %vm217, %v215, 0.0
      %v219 = vsel %vm217, %v216, 0.0
      %v220 = vadd.f32 %v218, %v219
      %221 = vadd.xlane.f32.xlu0 %v220
      %v222 = vpop.xlane.xlu0 %221
      %v223 = vrot.slane %v222, 4
      %v224 = vadd.f32 %v222, %v223
      %v225 = vrot.slane %v224, 2
      %v226 = vadd.f32 %v224, %v225
      %v227 = vrot.slane %v226, 1
      %v228 = vadd.f32 %v226, %v227
      %s229 = vtos %v228
      %v230 = vld [vmem:[#allocation3] sm:$0x3]
      %v232 = vlaneseq
      %v233 = vshrl.u32 %v232, 7
      %v234 = vsub.s32 0, %v233
      %v235 = vrot.slane %v230, %v234
      %v236 = vlaneseq
      %v237 = vshrl.u32 %v236, 7
      %v238 = vsub.s32 1, %v237
      %v239 = vrot.slane %v230, %v238
      %v242 = vsel %vm201, 0.0, %v235
      %v243 = vsel %vm202, 0.0, %v239
      %v244 = vsel %vm217, %v242, 0.0
      %v245 = vsel %vm217, %v243, 0.0
      %v246 = vadd.f32 %v244, %v245
      %247 = vadd.xlane.f32.xlu0 %v246
      %v248 = vpop.xlane.xlu0 %247
      %v249 = vrot.slane %v248, 4
      %v250 = vadd.f32 %v248, %v249
      %v251 = vrot.slane %v250, 2
      %v252 = vadd.f32 %v250, %v251
      %v253 = vrot.slane %v252, 1
      %v254 = vadd.f32 %v252, %v253
      %s255 = vtos %v254
      %v256 = vld [vmem:[#allocation4] sm:$0x3]
      %v258 = vlaneseq
      %v259 = vshrl.u32 %v258, 7
      %v260 = vsub.s32 0, %v259
      %v261 = vrot.slane %v256, %v260
      %v262 = vlaneseq
      %v263 = vshrl.u32 %v262, 7
      %v264 = vsub.s32 1, %v263
      %v265 = vrot.slane %v256, %v264
      %v268 = vsel %vm201, 0.0, %v261
      %v269 = vsel %vm202, 0.0, %v265
      %v270 = vsel %vm217, %v268, 0.0
      %v271 = vsel %vm217, %v269, 0.0
      %v272 = vadd.f32 %v270, %v271
      %273 = vadd.xlane.f32.xlu0 %v272
      %v274 = vpop.xlane.xlu0 %273
      %v275 = vrot.slane %v274, 4
      %v276 = vadd.f32 %v274, %v275
      %v277 = vrot.slane %v276, 2
      %v278 = vadd.f32 %v276, %v277
      %v279 = vrot.slane %v278, 1
      %v280 = vadd.f32 %v278, %v279
      %s281 = vtos %v280
      %v282 = vlaneseq
      %v283 = vshrl.u32 %v282, 7
      %vm284 = vcmp.eq.s32.totalorder %v283, 0
      %vm285 = vcmp.eq.s32.totalorder %v283, 1
      %vm286 = vcmp.eq.s32.totalorder %v283, 2
      %v287 = vstv %s281
      %v288 = vsel %vm286, %v287, 0.0
      %v289 = vstv %s255
      %v290 = vsel %vm285, %v289, %v288
      %v291 = vstv %s229
      %v292 = vsel %vm284, %v291, %v290
      %293 = vst [vmem:[#allocation11] sm:$0xff] %v292
    $region33: #{tpu_custom_call.1} parent=1 // pred_fallthru
      _
    // Predicated region
    $region34: #{tpu_custom_call.1} parent=1 // pred_check
      _
    $region35: #{tpu_custom_call.1} parent=1 // pred_check_branch
      %295 = sbr.rel (0) target = $region37
    $region36: #{tpu_custom_call.1} parent=1 // pred_region
      %s297 = ssub.s32 128, 128
      %298 = vsyncadd [#allocation7], %s297
      %s300 = sshll.u32 [#allocation11], 4
      %s301 = int_to_ptr.vmem [resolvable:$true] %s300
      %303 = dma.vmem_to_hbm [thread:$0]  %s301, 128, %s3, [#allocation7]
    $region37: #{tpu_custom_call.1} parent=1 // pred_fallthru
      _
    // Predicated region
    $region38: #{tpu_custom_call.1} parent=1 // pred_check
      _
    $region39: #{tpu_custom_call.1} parent=1 // pred_check_branch
      %305 = sbr.rel (0) target = $region41
    $region40: #{tpu_custom_call.1} parent=1 // pred_region
      %306 = dma.done [#allocation7], 128
    $region41: #{tpu_custom_call.1} parent=1 // pred_fallthru
      _
    %307 = vsyncpa [#allocation6], 1
    %308 = vsyncpa [#allocation9], 1
    %309 = vsyncpa [#allocation7], 1

</llo_original>
